<compile_context>
chip_gen: v6e
topology: v6e:2x2x1
jax: 0.10.0
libtpu: 0.0.40
codegen_flags: <defaults>
</compile_context>

<pallas_src>
import math
import functools

import jax
import jax.numpy as jnp
from jax.experimental import pallas as pl
from jax.experimental.pallas import tpu as pltpu


def _round_up(a, b):
    return ((a + b - 1) // b) * b


# ---------------------------------------------------------------------------
# Kernel 1: out = x * sqrt(d_model)   (HBM-bound elementwise stream)
# ---------------------------------------------------------------------------
def _scale_kernel(x_ref, o_ref, *, xscale):
    o_ref[...] = x_ref[...] * xscale


def _scaled_copy(x, xscale):
    shape = x.shape
    dtype = x.dtype
    total = 1
    for s in shape:
        total *= s
    itemsize = jnp.dtype(dtype).itemsize
    sub = max(8, 32 // itemsize)           # sublane packing: 8 f32 / 16 bf16 / 32 int8

    if total % 128 == 0:
        lanes = 128                        # lane-dense: unmasked vld / vst
        rows = total // 128
    else:
        # TODO(synk): totals that are not a multiple of 128 fall back to a
        # (B*T, D) view with full-extent last dim (masked partial stores).
        lanes = shape[-1]
        rows = total // lanes
    x2d = x.reshape(rows, lanes)

    # ~4 MiB blocks; at least 2 balanced blocks when splittable so both v7x
    # TensorCores stream HBM.  in+out double-buffered => ~16 MiB of VMEM.
    max_tile_rows = max(sub, (4 * 1024 * 1024) // (lanes * itemsize))
    min_blocks = 2 if rows > sub else 1
    nblk = max(min_blocks, pl.cdiv(rows, max_tile_rows))
    tile_rows = min(rows, _round_up(pl.cdiv(rows, nblk), sub))
    nblk = pl.cdiv(rows, tile_rows)

    out2d = pl.pallas_call(
        functools.partial(_scale_kernel, xscale=xscale),
        out_shape=jax.ShapeDtypeStruct((rows, lanes), dtype),
        grid=(nblk,),
        in_specs=[pl.BlockSpec((tile_rows, lanes), lambda i: (i, 0))],
        out_specs=pl.BlockSpec((tile_rows, lanes), lambda i: (i, 0)),
        compiler_params=pltpu.CompilerParams(
            dimension_semantics=("parallel",),
            vmem_limit_bytes=32 * 1024 * 1024),
    )(x2d)
    return out2d.reshape(shape)


# ---------------------------------------------------------------------------
# Kernel 2: relative positional-encoding table (tiny, EUP-bound)
# ---------------------------------------------------------------------------
def _pe_kernel(coef_ref, pe_ref, *, time, pe_rows_per_row):
    R, C = pe_ref.shape
    row0 = (pl.program_id(0) * R).astype(jnp.float32)
    local = jax.lax.broadcasted_iota(jnp.float32, (R, C), 0)
    inv_freq = coef_ref[0:1, :]            # (1, C) column-only, hoisted
    is_odd = coef_ref[1:2, :]              # (1, C): 1.0 on odd model columns
    lane_sub = coef_ref[2:3, :]            # (1, C): PE-row offset within a slab row
    pe_row = (row0 + local) * float(pe_rows_per_row) + lane_sub
    ang = (float(time - 1) - pe_row) * inv_freq
    pe_ref[...] = jnp.where(is_odd > 0.5, jnp.cos(ang), jnp.sin(ang)).astype(pe_ref.dtype)


def _rel_pe_table(T, D, dtype):
    L = 2 * T - 1
    itemsize = jnp.dtype(dtype).itemsize
    sub = max(8, 32 // itemsize)
    neg_ln = -math.log(10000.0) / D

    if D % 128 != 0 and 128 % D == 0:
        # Lane-dense slab: each 128-lane row packs q consecutive PE rows.
        q = 128 // D
        C = 128
        L_pad = _round_up(L, q)
        slab_rows = L_pad // q
        lane = jnp.arange(128, dtype=jnp.int32)
        j = lane % D
        lane_sub = (lane // D).astype(jnp.float32)
    else:
        # Natural (L, D) layout (lane-dense when D % 128 == 0).
        # TODO(synk): D neither a multiple nor a divisor of 128 uses masked
        #             partial stores here; PE is tiny so the impact is small.
        q = 1
        C = D
        L_pad = L
        slab_rows = L
        j = jnp.arange(D, dtype=jnp.int32)
        lane_sub = jnp.zeros((C,), jnp.float32)

    inv_freq = jnp.exp((j - (j % 2)).astype(jnp.float32) * neg_ln)
    is_odd = (j % 2).astype(jnp.float32)
    coef = jnp.stack([inv_freq, is_odd, lane_sub], axis=0)       # (3, C)

    # Block rows: <= ~2 MiB per block, rounded to the dtype's sublane packing.
    max_rows = max(sub, (2 * 1024 * 1024) // (C * itemsize))
    if slab_rows <= max_rows:
        pe_rows = slab_rows                                      # full extent
    else:
        pe_rows = max(sub, (max_rows // sub) * sub)
    nblk = pl.cdiv(slab_rows, pe_rows)

    slab = pl.pallas_call(
        functools.partial(_pe_kernel, time=T, pe_rows_per_row=q),
        out_shape=jax.ShapeDtypeStruct((slab_rows, C), dtype),
        grid=(nblk,),
        in_specs=[pl.BlockSpec((3, C), lambda i: (0, 0))],       # coef, resident
        out_specs=pl.BlockSpec((pe_rows, C), lambda i: (i, 0)),  # written exactly once
        compiler_params=pltpu.CompilerParams(
            dimension_semantics=("arbitrary",),
            vmem_limit_bytes=32 * 1024 * 1024),
    )(coef)

    pe = slab.reshape(L_pad, D)[:L]        # slice is a no-op unless L was padded (tiny)
    return pe.reshape(1, L, D)


# ---------------------------------------------------------------------------
# Module forward
# ---------------------------------------------------------------------------
def rel_positional_encoding(x):
    """x: (B, T, D) -> (x * sqrt(D), pos_emb of shape (1, 2T-1, D))."""
    B, T, D = x.shape
    xscale = math.sqrt(float(D))
    scaled = _scaled_copy(x, xscale)
    pos_emb = _rel_pe_table(T, D, x.dtype)
    return scaled, pos_emb


def _reference(x):
    """Pure-JAX reference matching the PyTorch forward (eval mode)."""
    B, T, D = x.shape
    xscale = math.sqrt(float(D))
    div_term = jnp.exp(jnp.arange(0, D, 2, dtype=jnp.float32)
                       * -(math.log(10000.0) / D))
    rel_pos = (T - 1) - jnp.arange(2 * T - 1, dtype=jnp.float32)
    ang = rel_pos[:, None] * div_term[None, :]
    pe = jnp.zeros((2 * T - 1, D), dtype=jnp.float32)
    pe = pe.at[:, 0::2].set(jnp.sin(ang))
    pe = pe.at[:, 1::2].set(jnp.cos(ang))
    return x * xscale, pe[None].astype(x.dtype)


if __name__ == "__main__":
    key = jax.random.PRNGKey(0)

    # --- small shape from the module spec (single-block, slab-PE path) -----
    B, T, D = 2, 8, 32
    x = jax.random.normal(key, (B, T, D), dtype=jnp.float32)
    out_x, pos_emb = rel_positional_encoding(x)
    out_x = jax.block_until_ready(out_x)
    pos_emb = jax.block_until_ready(pos_emb)
    ref_x, ref_pe = _reference(x)
    assert out_x.shape == (B, T, D)
    assert pos_emb.shape == (1, 2 * T - 1, D)
    assert jnp.allclose(out_x, ref_x, atol=1e-5, rtol=1e-5)
    assert jnp.allclose(pos_emb, ref_pe, atol=1e-5, rtol=1e-5)

    # --- larger shape exercising the tiled / balanced two-block path -------
    B2, T2, D2 = 40, 64, 64          # rows=1280 -> 2 balanced grid steps
    x2 = jax.random.normal(jax.random.PRNGKey(1), (B2, T2, D2),
                           dtype=jnp.float32)
    out_x2, pos_emb2 = rel_positional_encoding(x2)
    out_x2 = jax.block_until_ready(out_x2)
    pos_emb2 = jax.block_until_ready(pos_emb2)
    ref_x2, ref_pe2 = _reference(x2)
    assert out_x2.shape == (B2, T2, D2)
    assert pos_emb2.shape == (1, 2 * T2 - 1, D2)
    assert jnp.allclose(out_x2, ref_x2, atol=1e-5, rtol=1e-5)
    assert jnp.allclose(pos_emb2, ref_pe2, atol=1e-4, rtol=1e-4)

    print("KERNEL_OK")
</pallas_src>

<mosaic_0001>
module attributes {stable_mosaic.version = 11 : i64} {
  func.func @_scale_kernel(%arg0: i32, %arg1: memref<4x128xf32, #tpu.memory_space<vmem>>, %arg2: memref<4x128xf32, #tpu.memory_space<vmem>>) attributes {dimension_semantics = [#tpu.dimension_semantics<parallel>], iteration_bounds = array<i64: 1>, scalar_prefetch = 0 : i64, scratch_operands = 0 : i64, tpu.core_type = #tpu.core_type<tc>, window_params = [{transform_indices = @transform_0, window_bounds = array<i64: 4, 128>}, {transform_indices = @transform_1, window_bounds = array<i64: 4, 128>}]} {
    %c0 = arith.constant 0 : index
    %c0_0 = arith.constant 0 : index
    %0 = vector.load %arg1[%c0, %c0_0] : memref<4x128xf32, #tpu.memory_space<vmem>>, vector<4x128xf32>
    %cst = arith.constant 5.65685415 : f32
    %1 = vector.broadcast %cst : f32 to vector<4x128xf32>
    %2 = arith.mulf %0, %1 : vector<4x128xf32>
    %c0_1 = arith.constant 0 : index
    %c0_2 = arith.constant 0 : index
    %3 = vector.load %arg2[%c0_1, %c0_2] : memref<4x128xf32, #tpu.memory_space<vmem>>, vector<4x128xf32>
    tpu.vector_store %arg2[%c0_1, %c0_2], %2 {strides = array<i32>} : memref<4x128xf32, #tpu.memory_space<vmem>>, vector<4x128xf32>,
    return
  }
  func.func @transform_0(%arg0: i32) -> (i32, i32) {
    %c0_i32 = arith.constant 0 : i32
    %c0_i32_0 = arith.constant 0 : i32
    return %arg0, %c0_i32 : i32, i32
  }
  func.func @transform_1(%arg0: i32) -> (i32, i32) {
    %c0_i32 = arith.constant 0 : i32
    %c0_i32_0 = arith.constant 0 : i32
    return %arg0, %c0_i32 : i32, i32
  }
}

</mosaic_0001>

<llo_original>
// kernel: tpu_custom_call.1
$region0: #{tpu_custom_call.1}
  #allocation0 [shape = 'u32[]', space=smem, size = 0x4, offset = 0x4, fixed_abs, tag = 'smem constant byte address 0x4 - core index']
  #allocation1 [shape = 'u32[144,128]{1,0:T(1,128)}', space=vmem, size = 0x12000, scoped, tag = 'internal scratch']
  %s0 = inlined_call_operand.hbm [shape: f32[4,128], index: 0, kind: input, shape index: {}]
  %s1 = inlined_call_operand.hbm [shape: f32[4,128], index: 1, kind: output, shape index: {}]
  %s2 = sld [smem:[#allocation0]]
  $region18: #{tpu_custom_call.1} parent=0
    _
  %s4 = ssub.s32 1, %s2
  %s5 = scalar_select 0, %s4, %s2
  $region1: #{tpu_custom_call.1} parent=0
    #allocation2 [shape = 'u8[2048]{0}', space=vmem, size = 0x800, scoped, tag = 'input window, operand 0, single buffered']
    #allocation3 [shape = 's32[1]{0}', space=sflag, size = 0x4, scoped, tag = 'scoped memory for tpu_custom_call.1']
    #allocation4 [shape = 's32[1]{0}', space=sflag, size = 0x4, scoped, tag = 'scoped memory for tpu_custom_call.1']
    #allocation5 [shape = 'u8[2048]{0}', space=vmem, size = 0x800, scoped, tag = 'output window, operand 0, single buffered']
    %6 = vsyncpa [#allocation3], 0
    %7 = vsyncpa [#allocation4], 0
    // Predicated region
    $region2: #{tpu_custom_call.1} parent=1 // pred_check
      _
    $region3: #{tpu_custom_call.1} parent=1 // pred_check_branch
      %9 = sbr.rel (0) target = $region5
    $region4: #{tpu_custom_call.1} parent=1 // pred_region
      %s11 = ssub.s32 64, 64
      %12 = vsyncadd [#allocation3], %s11
      %s14 = sshll.u32 [#allocation2], 4
      %s15 = int_to_ptr.vmem [resolvable:$true] %s14
      %17 = dma.hbm_to_vmem [thread:$0]  %s0, 64, %s15, [#allocation3]
    $region5: #{tpu_custom_call.1} parent=1 // pred_fallthru
      _
    // Predicated region
    $region6: #{tpu_custom_call.1} parent=1 // pred_check
      _
    $region7: #{tpu_custom_call.1} parent=1 // pred_check_branch
      %19 = sbr.rel (0) target = $region9
    $region8: #{tpu_custom_call.1} parent=1 // pred_region
      %20 = dma.done [#allocation3], 64
    $region9: #{tpu_custom_call.1} parent=1 // pred_fallthru
      _
    %v21 = vld [vmem:[#allocation2] sm:$0xf]
    %v22 = vmul.f32 %v21, 5.656854
    %23 = vst [vmem:[#allocation5] sm:$0xf] %v22
    // Predicated region
    $region10: #{tpu_custom_call.1} parent=1 // pred_check
      _
    $region11: #{tpu_custom_call.1} parent=1 // pred_check_branch
      %25 = sbr.rel (0) target = $region13
    $region12: #{tpu_custom_call.1} parent=1 // pred_region
      %s27 = ssub.s32 64, 64
      %28 = vsyncadd [#allocation4], %s27
      %s30 = sshll.u32 [#allocation5], 4
      %s31 = int_to_ptr.vmem [resolvable:$true] %s30
      %33 = dma.vmem_to_hbm [thread:$0]  %s31, 64, %s1, [#allocation4]
    $region13: #{tpu_custom_call.1} parent=1 // pred_fallthru
      _
    // Predicated region
    $region14: #{tpu_custom_call.1} parent=1 // pred_check
      _
    $region15: #{tpu_custom_call.1} parent=1 // pred_check_branch
      %35 = sbr.rel (0) target = $region17
    $region16: #{tpu_custom_call.1} parent=1 // pred_region
      %36 = dma.done [#allocation4], 64
    $region17: #{tpu_custom_call.1} parent=1 // pred_fallthru
      _
    %37 = vsyncpa [#allocation3], 1
    %38 = vsyncpa [#allocation4], 1

</llo_original>
